<compile_context>
chip_gen: v7x
topology: tpu7x:2x2x1
jax: 0.10.0
libtpu: 0.0.40
codegen_flags: <defaults>
</compile_context>

<pallas_src>
import math

import jax
import jax.numpy as jnp
from jax.experimental import pallas as pl
from jax.experimental.pallas import tpu as pltpu


def token_embedding_kernel(x_ref, w_ref, o_ref):
    # x_ref: (TL, 3C) pre-shifted tap concat; w_ref: (3C, D); o_ref: (TL, D)
    o_ref[...] = jnp.dot(
        x_ref[...], w_ref[...], preferred_element_type=jnp.float32
    ).astype(o_ref.dtype)


def _round_up(v, m):
    return (v + m - 1) // m * m


def _pick_tile_rows(n_rows, c3, d_model, compute_bytes, out_bytes,
                    target_out_bytes=4 << 20, vmem_budget=20 << 20,
                    max_tile=4096):
    """Rows per tile: ~target_out_bytes of output per grid step, capped so the
    double-buffered VMEM footprint stays under vmem_budget (v7x-safe)."""
    # Input tile is lane-padded to a multiple of 128; output tile is (TL, D).
    in_lanes = max(128, _round_up(c3, 128))
    d_lanes = max(128, _round_up(d_model, 128))
    per_row = 2 * (in_lanes * compute_bytes + d_lanes * out_bytes)  # x2 buffers
    tl_bytes = max(1, target_out_bytes // max(1, d_lanes * out_bytes))
    tl_vmem = max(1, vmem_budget // per_row)
    tl = min(max_tile, tl_bytes, tl_vmem)
    tl = max(8, (tl // 8) * 8)          # second-to-last block dim: multiple of 8
    if tl >= n_rows:
        return n_rows                   # full extent: always a legal block shape
    return tl


def token_embedding(x, weight, *, compute_dtype=jnp.bfloat16, out_dtype=None):
    """x: (B, L, c_in); weight: (d_model, c_in, 3) (PyTorch Conv1d layout)."""
    B, L, C = x.shape
    D = weight.shape[0]
    out_dtype = x.dtype if out_dtype is None else out_dtype

    # Fused weight: per-tap slices stacked along the contraction axis -> (3C, D).
    # Tap order (t-1, t, t+1) matches the x_cat concat order below.
    w_cat = jnp.concatenate(
        [weight[:, :, 0].T, weight[:, :, 1].T, weight[:, :, 2].T], axis=0
    ).astype(compute_dtype)                                    # (3C, D)

    # Circular halo baked in per-batch BEFORE flattening rows, so the kernel
    # never needs cross-tile (or cross-batch) halo reads.
    x_cat = jnp.concatenate(
        [jnp.roll(x, 1, axis=1), x, jnp.roll(x, -1, axis=1)], axis=-1
    ).astype(compute_dtype)                                    # (B, L, 3C)
    x_rows = x_cat.reshape(B * L, 3 * C)                       # row-major, free

    N = B * L
    tl = _pick_tile_rows(
        N, 3 * C, D,
        jnp.dtype(compute_dtype).itemsize, jnp.dtype(out_dtype).itemsize)
    grid = (pl.cdiv(N, tl),)

    out = pl.pallas_call(
        token_embedding_kernel,
        out_shape=jax.ShapeDtypeStruct((N, D), out_dtype),
        grid_spec=pltpu.PrefetchScalarGridSpec(
            num_scalar_prefetch=0,
            grid=grid,
            in_specs=[
                pl.BlockSpec((tl, 3 * C), lambda i: (i, 0)),
                pl.BlockSpec((3 * C, D), lambda i: (0, 0)),   # weight resident
            ],
            out_specs=pl.BlockSpec((tl, D), lambda i: (i, 0)),
        ),
        compiler_params=pltpu.CompilerParams(
            dimension_semantics=("parallel",),
            vmem_limit_bytes=32 * 1024 * 1024,
        ),
    )(x_rows, w_cat)
    return out.reshape(B, L, D)


def reference_token_embedding(x, weight):
    """Plain-JAX f32 reference: circular conv1d (k=3, pad=1, no bias)."""
    x_prev = jnp.roll(x, shift=1, axis=1)
    x_next = jnp.roll(x, shift=-1, axis=1)
    return (x_prev @ weight[:, :, 0].T
            + x @ weight[:, :, 1].T
            + x_next @ weight[:, :, 2].T)


if __name__ == "__main__":
    key = jax.random.PRNGKey(0)
    k_x, k_w = jax.random.split(key)

    # d_model = 128 keeps output stores lane-dense (multiple of 128 lanes).
    B, L, c_in, d_model = 2, 16, 4, 128

    # Deterministic kaiming_normal_(mode='fan_in', nonlinearity='leaky_relu')
    fan_in = c_in * 3
    gain = math.sqrt(2.0 / (1.0 + 0.01 ** 2))
    std = gain / math.sqrt(fan_in)
    weight = std * jax.random.normal(k_w, (d_model, c_in, 3), dtype=jnp.float32)

    x = jax.random.normal(k_x, (B, L, c_in), dtype=jnp.float32)

    ref = reference_token_embedding(x, weight)

    # float32 compute path: tight check of the fused-GEMM kernel structure.
    out_f32 = jax.block_until_ready(
        token_embedding(x, weight, compute_dtype=jnp.float32))
    assert out_f32.shape == (B, L, d_model)
    assert jnp.allclose(out_f32, ref, atol=1e-5, rtol=1e-5)

    # Default bf16 compute path (perf config): bf16 inputs, f32 accumulation.
    out = jax.block_until_ready(token_embedding(x, weight))
    assert out.shape == (B, L, d_model)
    assert jnp.allclose(out, ref, atol=2e-2, rtol=2e-2)

    # bf16-output path (halves the dominant HBM stream for bf16 pipelines).
    out_bf16 = jax.block_until_ready(
        token_embedding(x, weight, out_dtype=jnp.bfloat16))
    assert out_bf16.dtype == jnp.bfloat16
    assert jnp.allclose(out_bf16.astype(jnp.float32), ref, atol=5e-2, rtol=5e-2)

    print("KERNEL_OK")
</pallas_src>

<mosaic_0001>
module attributes {stable_mosaic.version = 11 : i64} {
  func.func @token_embedding_kernel(%arg0: i32, %arg1: memref<32x12xf32, #tpu.memory_space<vmem>>, %arg2: memref<12x128xf32, #tpu.memory_space<vmem>>, %arg3: memref<32x128xf32, #tpu.memory_space<vmem>>) attributes {dimension_semantics = [#tpu.dimension_semantics<parallel>], iteration_bounds = array<i64: 1>, scalar_prefetch = 0 : i64, scratch_operands = 0 : i64, tpu.core_type = #tpu.core_type<tc>, window_params = [{transform_indices = @transform_0, window_bounds = array<i64: 32, 12>}, {pipeline_mode = #tpu.pipeline_mode<synchronous>, transform_indices = @transform_1, window_bounds = array<i64: 12, 128>}, {transform_indices = @transform_2, window_bounds = array<i64: 32, 128>}]} {
    %c0 = arith.constant 0 : index
    %c0_0 = arith.constant 0 : index
    %0 = vector.load %arg1[%c0, %c0_0] : memref<32x12xf32, #tpu.memory_space<vmem>>, vector<32x12xf32>
    %c0_1 = arith.constant 0 : index
    %c0_2 = arith.constant 0 : index
    %1 = vector.load %arg2[%c0_1, %c0_2] : memref<12x128xf32, #tpu.memory_space<vmem>>, vector<12x128xf32>
    %cst = arith.constant dense<0.000000e+00> : vector<32x128xf32>
    %2 = tpu.matmul %0, %1, %cst {dimension_numbers = #tpu.dot_dimension_numbers<[1], [0], [0], [1], [0, 0, 1, 1], [], []>} : vector<32x12xf32>, vector<12x128xf32>, vector<32x128xf32> -> vector<32x128xf32>
    %c0_3 = arith.constant 0 : index
    %c0_4 = arith.constant 0 : index
    %3 = vector.load %arg3[%c0_3, %c0_4] : memref<32x128xf32, #tpu.memory_space<vmem>>, vector<32x128xf32>
    tpu.vector_store %arg3[%c0_3, %c0_4], %2 {strides = array<i32>} : memref<32x128xf32, #tpu.memory_space<vmem>>, vector<32x128xf32>,
    return
  }
  func.func @transform_0(%arg0: i32) -> (i32, i32) {
    %c0_i32 = arith.constant 0 : i32
    %c0_i32_0 = arith.constant 0 : i32
    return %arg0, %c0_i32 : i32, i32
  }
  func.func @transform_1(%arg0: i32) -> (i32, i32) {
    %c0_i32 = arith.constant 0 : i32
    %c0_i32_0 = arith.constant 0 : i32
    %c0_i32_1 = arith.constant 0 : i32
    return %c0_i32, %c0_i32_0 : i32, i32
  }
  func.func @transform_2(%arg0: i32) -> (i32, i32) {
    %c0_i32 = arith.constant 0 : i32
    %c0_i32_0 = arith.constant 0 : i32
    return %arg0, %c0_i32 : i32, i32
  }
}

</mosaic_0001>

<llo_original>
// kernel: tpu_custom_call.1
$region0: #{tpu_custom_call.1}
  #allocation0 [shape = 'u32[]', space=smem, size = 0x4, offset = 0x4, fixed_abs, tag = 'smem constant byte address 0x4 - core index']
  #allocation1 [shape = 'u32[144,128]{1,0:T(1,128)}', space=vmem, size = 0x12000, scoped, tag = 'internal scratch']
  %s0 = inlined_call_operand.vmem [shape: f32[32,12], index: 0, kind: input, shape index: {}]
  %s1 = inlined_call_operand.vmem [shape: f32[12,128], index: 1, kind: input, shape index: {}]
  %s2 = inlined_call_operand.hbm [shape: f32[32,128], index: 2, kind: output, shape index: {}]
  %s3 = sld [smem:[#allocation0]]
  $region18: #{tpu_custom_call.1} parent=0
    _
  %s5 = ssub.s32 1, %s3
  %s6 = scalar_select 0, %s5, %s3
  $region1: #{tpu_custom_call.1} parent=0
    #allocation2 [shape = 'u8[16384]{0}', space=vmem, size = 0x4000, scoped, tag = 'output window, operand 0, single buffered']
    #allocation3 [shape = 's32[1]{0}', space=sflag, size = 0x4, scoped, tag = 'scoped memory for tpu_custom_call.1']
    %7 = vsyncpa [#allocation3], 0
    // Predicated region
    $region2: #{tpu_custom_call.1} parent=1 // pred_check
      _
    $region3: #{tpu_custom_call.1} parent=1 // pred_check_branch
      %9 = sbr.rel (0) target = $region5
    $region4: #{tpu_custom_call.1} parent=1 // pred_region
      _
    $region5: #{tpu_custom_call.1} parent=1 // pred_fallthru
      _
    // Predicated region
    $region6: #{tpu_custom_call.1} parent=1 // pred_check
      _
    $region7: #{tpu_custom_call.1} parent=1 // pred_check_branch
      %11 = sbr.rel (0) target = $region9
    $region8: #{tpu_custom_call.1} parent=1 // pred_region
      _
    $region9: #{tpu_custom_call.1} parent=1 // pred_fallthru
      _
    %v12 = vld [vmem:[%s0] sm:$0xff]
    %v13 = vld [vmem:[%s0 + $0x8] sm:$0xff]
    %v14 = vld [vmem:[%s0 + $0x10] sm:$0xff]
    %v15 = vld [vmem:[%s0 + $0x18] sm:$0xff]
    %v16 = vld [vmem:[%s1] sm:$0xff]
    %v17 = vld [vmem:[%s1 + $0x8] sm:$0xf]
    %vm18 = vcmask 97280
    %v20 = vsel %vm18, %v12, 0
    %v23 = vsel %vm18, %v13, 0
    %v26 = vsel %vm18, %v14, 0
    %v29 = vsel %vm18, %v15, 0
    %vm31 = vcmask 1043456
    %v33 = vsel %vm31, %v17, 0
    %35 = vmatprep.subr.mxu0 0.0
    %36 = vmatpush1.msra.mxu0 %v16
    %37 = vmatprep.subr.mxu0 0.0
    %38 = vmatpush1.msra.mxu0 %v33
    %39 = vmatprep.subr.mxu0 0.0
    %40 = vmatpush1.msra.mxu0 0.0
    %41 = vmatprep.subr.mxu0 0.0
    %42 = vmatpush1.msra.mxu0 0.0
    %43 = vmatprep.subr.mxu0 0.0
    %44 = vmatpush1.msra.mxu0 0.0
    %45 = vmatprep.subr.mxu0 0.0
    %46 = vmatpush1.msra.mxu0 0.0
    %47 = vmatprep.subr.mxu0 0.0
    %48 = vmatpush1.msra.mxu0 0.0
    %49 = vmatprep.subr.mxu0 0.0
    %50 = vmatpush1.msra.mxu0 0.0
    %51 = vmatprep.subr.mxu0 0.0
    %52 = vmatpush1.msra.mxu0 0.0
    %53 = vmatprep.subr.mxu0 0.0
    %54 = vmatpush1.msra.mxu0 0.0
    %55 = vmatprep.subr.mxu0 0.0
    %56 = vmatpush1.msra.mxu0 0.0
    %57 = vmatprep.subr.mxu0 0.0
    %58 = vmatpush1.msra.mxu0 0.0
    %59 = vmatprep.subr.mxu0 0.0
    %60 = vmatpush1.msra.mxu0 0.0
    %61 = vmatprep.subr.mxu0 0.0
    %62 = vmatpush1.msra.mxu0 0.0
    %63 = vmatprep.subr.mxu0 0.0
    %64 = vmatpush1.msra.mxu0 0.0
    %65 = vmatprep.subr.mxu0 0.0
    %66 = vmatpush1.msra.mxu0 0.0
    %67 = vmatprep.subr.mxu0 0.0
    %68 = vmatpush1.msra.mxu0 0.0
    %69 = vmatprep.subr.mxu0 0.0
    %70 = vmatpush1.msra.mxu0 0.0
    %71 = vmatprep.subr.mxu0 0.0
    %72 = vmatpush1.msra.mxu0 0.0
    %73 = vmatprep.subr.mxu0 0.0
    %74 = vmatpush1.msra.mxu0 0.0
    %75 = vmatprep.subr.mxu0 0.0
    %76 = vmatpush1.msra.mxu0 0.0
    %77 = vmatprep.subr.mxu0 0.0
    %78 = vmatpush1.msra.mxu0 0.0
    %79 = vmatprep.subr.mxu0 0.0
    %80 = vmatpush1.msra.mxu0 0.0
    %81 = vmatprep.subr.mxu0 0.0
    %82 = vmatpush1.msra.mxu0 0.0
    %83 = vmatprep.subr.mxu0 0.0
    %84 = vmatpush1.msra.mxu0 0.0
    %85 = vmatprep.subr.mxu0 0.0
    %86 = vmatpush1.msra.mxu0 0.0
    %87 = vmatprep.subr.mxu0 0.0
    %88 = vmatpush1.msra.mxu0 0.0
    %89 = vmatprep.subr.mxu0 0.0
    %90 = vmatpush1.msra.mxu0 0.0
    %91 = vmatprep.subr.mxu0 0.0
    %92 = vmatpush1.msra.mxu0 0.0
    %93 = vmatprep.subr.mxu0 0.0
    %94 = vmatpush1.msra.mxu0 0.0
    %95 = vmatprep.subr.mxu0 0.0
    %96 = vmatpush1.msra.mxu0 0.0
    %97 = vmatprep.subr.mxu0 0.0
    %98 = vmatpush1.msra.mxu0 0.0
    %99 = vmatprep.mubr.f32.mxu0 0.0
    %100 = vmatmul.mubr.f32.gmra.mrb[0].mxu0 %v20
    %v101 = vpop.f32.mrb[0].mxu0
    %v102 = vadd.f32 0.0, %v101
    %v103 = vpop.f32.mrb[0].mxu0
    %104 = vmatprep.mubr.f32.mxu0 0.0
    %105 = vmatmul.mubr.f32.gmra.mrb[0].mxu0 %v23
    %v106 = vpop.f32.mrb[0].mxu0
    %v107 = vadd.f32 0.0, %v106
    %v108 = vpop.f32.mrb[0].mxu0
    %109 = vmatprep.mubr.f32.mxu0 0.0
    %110 = vmatmul.mubr.f32.gmra.mrb[0].mxu0 %v26
    %v111 = vpop.f32.mrb[0].mxu0
    %v112 = vadd.f32 0.0, %v111
    %v113 = vpop.f32.mrb[0].mxu0
    %114 = vmatprep.mubr.f32.mxu0 0.0
    %115 = vmatmul.mubr.f32.gmra.mrb[0].mxu0 %v29
    %v116 = vpop.f32.mrb[0].mxu0
    %v117 = vadd.f32 0.0, %v116
    %v118 = vpop.f32.mrb[0].mxu0
    %119 = vdwg.mxu0
    %120 = vst [vmem:[#allocation2] sm:$0xff] %v102
    %121 = vst [vmem:[#allocation2 + $0x8] sm:$0xff] %v107
    %122 = vst [vmem:[#allocation2 + $0x10] sm:$0xff] %v112
    %123 = vst [vmem:[#allocation2 + $0x18] sm:$0xff] %v117
    // Predicated region
    $region10: #{tpu_custom_call.1} parent=1 // pred_check
      _
    $region11: #{tpu_custom_call.1} parent=1 // pred_check_branch
      %125 = sbr.rel (0) target = $region13
    $region12: #{tpu_custom_call.1} parent=1 // pred_region
      %s127 = ssub.s32 512, 512
      %128 = vsyncadd [#allocation3], %s127
      %s129 = sshll.u32 [#allocation2], 4
      %s130 = int_to_ptr.vmem [resolvable:$true] %s129
      %135 = dma.vmem_to_hbm [thread:$0]  %s130, 512, %s2, [#allocation3], 128, 128, 8
    $region13: #{tpu_custom_call.1} parent=1 // pred_fallthru
      _
    // Predicated region
    $region14: #{tpu_custom_call.1} parent=1 // pred_check
      _
    $region15: #{tpu_custom_call.1} parent=1 // pred_check_branch
      %137 = sbr.rel (0) target = $region17
    $region16: #{tpu_custom_call.1} parent=1 // pred_region
      %138 = dma.done [#allocation3], 512
    $region17: #{tpu_custom_call.1} parent=1 // pred_fallthru
      _
    %139 = vsyncpa [#allocation3], 1

</llo_original>
